<compile_context>
chip_gen: v7x
topology: tpu7x:2x2x1
jax: 0.10.0
libtpu: 0.0.40
codegen_flags: <defaults>
</compile_context>

<pallas_src>
import functools

import jax
import jax.numpy as jnp
from jax.experimental import pallas as pl
from jax.experimental.pallas import tpu as pltpu


def _round_up(x, m):
    return (x + m - 1) // m * m


# --------------------------------------------------------------------------
# Kernel 1: per-node projections  XWl = X @ Wl^T,  S = X @ Wr^T + b
# (weights already transposed & padded in the wrapper; padded rows masked to 0
#  so they cannot contaminate the batch-norm statistics downstream)
# --------------------------------------------------------------------------
def _proj_kernel(x_ref, wlT_ref, wrT_ref, b_ref, xwl_ref, s_ref, *, tm, n_real):
    x = x_ref[...]                                                # bf16 (TM, Fin_p)
    xwl = jnp.dot(x, wlT_ref[...], preferred_element_type=jnp.float32)
    xwr = jnp.dot(x, wrT_ref[...], preferred_element_type=jnp.float32)
    s = xwr + b_ref[...]
    row0 = pl.program_id(0) * tm
    rows = row0 + jax.lax.broadcasted_iota(jnp.int32, s.shape, 0)
    s = jnp.where(rows < n_real, s, 0.0)                          # zero padded rows
    xwl_ref[...] = xwl.astype(xwl_ref.dtype)
    s_ref[...] = s


# --------------------------------------------------------------------------
# Kernel 2: tiled aggregation  H = relu(A @ XWl + S)  +  BN partial statistics
# grid = (N/TM, N/TK); accumulator lives in VMEM scratch across the K axis.
# --------------------------------------------------------------------------
def _agg_kernel(a_ref, xwl_ref, s_ref, h_ref, stats_ref, acc_ref):
    k = pl.program_id(1)

    @pl.when(k == 0)
    def _():
        acc_ref[...] = jnp.zeros_like(acc_ref)

    acc_ref[...] += jnp.dot(a_ref[...], xwl_ref[...],
                            preferred_element_type=jnp.float32)

    @pl.when(k == pl.num_programs(1) - 1)
    def _():
        h = jnp.maximum(acc_ref[...] + s_ref[...], 0.0)           # self-term + ReLU
        h_ref[...] = h
        ssum = jnp.sum(h, axis=0, keepdims=True)                  # (1, Fp)
        ssq = jnp.sum(h * h, axis=0, keepdims=True)               # (1, Fp)
        row = jax.lax.broadcasted_iota(jnp.int32, stats_ref.shape, 0)
        stats_ref[...] = jnp.where(row == 0, ssum,
                                   jnp.where(row == 1, ssq, 0.0))


# --------------------------------------------------------------------------
# Kernel 3: batch-norm (global batch statistics) + affine + residual
# --------------------------------------------------------------------------
def _bn_res_kernel(h_ref, x_ref, mean_ref, var_ref, gamma_ref, beta_ref, o_ref,
                   *, residual):
    h = h_ref[...]
    h = (h - mean_ref[...]) * jax.lax.rsqrt(var_ref[...] + 1e-5)
    h = h * gamma_ref[...] + beta_ref[...]
    if residual:
        h = h + x_ref[...]
    o_ref[...] = h


# --------------------------------------------------------------------------
# Wrapper
# --------------------------------------------------------------------------
def graphsage_layer(feature, edge_index, params, *, residual=True, tm=128, tk=128):
    """feature: [N, F_in] f32, edge_index: [2, E] int32 (row 0 = src, row 1 = dst)."""
    n, f_in = feature.shape
    w_l, w_r, bias, gamma, beta = params
    f_out = w_l.shape[0]
    residual = residual and (f_in == f_out)     # module disables residual otherwise

    fin_p = _round_up(f_in, 128)                # lane-dense feature widths
    fout_p = _round_up(f_out, 128)
    np_ = _round_up(n, max(tm, tk))             # node axis padded to the tile grid
    num_m = np_ // tm
    num_k = np_ // tk

    # ---- glue: dense row-normalized adjacency from edge_index ----------------
    src, dst = edge_index[0], edge_index[1]
    adj = jnp.zeros((n, n), jnp.float32).at[dst, src].add(1.0)
    deg = jnp.sum(adj, axis=1, keepdims=True)
    a_norm = adj / jnp.maximum(deg, 1.0)        # nodes w/o in-edges aggregate to 0

    # ---- padding + dtype casts (bf16 inputs, f32 accumulation) ---------------
    a_p = jnp.zeros((np_, np_), jnp.bfloat16).at[:n, :n].set(
        a_norm.astype(jnp.bfloat16))
    x_bf = jnp.zeros((np_, fin_p), jnp.bfloat16).at[:n, :f_in].set(
        feature.astype(jnp.bfloat16))
    x_res = jnp.zeros((np_, fout_p), jnp.float32)
    if residual:
        x_res = x_res.at[:n, :f_out].set(feature)

    wlT = jnp.zeros((fin_p, fout_p), jnp.bfloat16).at[:f_in, :f_out].set(
        w_l.T.astype(jnp.bfloat16))
    wrT = jnp.zeros((fin_p, fout_p), jnp.bfloat16).at[:f_in, :f_out].set(
        w_r.T.astype(jnp.bfloat16))
    b_p = jnp.zeros((1, fout_p), jnp.float32).at[:, :f_out].set(bias.reshape(1, -1))
    gamma_p = jnp.ones((1, fout_p), jnp.float32).at[:, :f_out].set(gamma.reshape(1, -1))
    beta_p = jnp.zeros((1, fout_p), jnp.float32).at[:, :f_out].set(beta.reshape(1, -1))

    # ---- kernel 1: projections -----------------------------------------------
    xwl, s_term = pl.pallas_call(
        functools.partial(_proj_kernel, tm=tm, n_real=n),
        out_shape=(jax.ShapeDtypeStruct((np_, fout_p), jnp.bfloat16),
                   jax.ShapeDtypeStruct((np_, fout_p), jnp.float32)),
        grid=(num_m,),
        in_specs=[pl.BlockSpec((tm, fin_p), lambda i: (i, 0)),
                  pl.BlockSpec((fin_p, fout_p), lambda i: (0, 0)),
                  pl.BlockSpec((fin_p, fout_p), lambda i: (0, 0)),
                  pl.BlockSpec((1, fout_p), lambda i: (0, 0))],
        out_specs=(pl.BlockSpec((tm, fout_p), lambda i: (i, 0)),
                   pl.BlockSpec((tm, fout_p), lambda i: (i, 0))),
        compiler_params=pltpu.CompilerParams(dimension_semantics=("parallel",)),
    )(x_bf, wlT, wrT, b_p)

    # ---- kernel 2: tiled aggregation + relu + BN partial sums ----------------
    cost = pl.CostEstimate(
        flops=2 * np_ * np_ * fout_p,
        transcendentals=0,
        bytes_accessed=(np_ * np_ * 2                       # A (bf16)
                        + num_m * np_ * fout_p * 2          # XWl re-read per row block
                        + np_ * fout_p * (4 + 4)            # S read + H write
                        + num_m * 8 * fout_p * 4),          # stats
    )
    h_pre, stats = pl.pallas_call(
        _agg_kernel,
        out_shape=(jax.ShapeDtypeStruct((np_, fout_p), jnp.float32),
                   jax.ShapeDtypeStruct((num_m * 8, fout_p), jnp.float32)),
        grid=(num_m, num_k),
        in_specs=[pl.BlockSpec((tm, tk), lambda i, k: (i, k)),
                  pl.BlockSpec((tk, fout_p), lambda i, k: (k, 0)),
                  pl.BlockSpec((tm, fout_p), lambda i, k: (i, 0))],
        out_specs=(pl.BlockSpec((tm, fout_p), lambda i, k: (i, 0)),
                   pl.BlockSpec((8, fout_p), lambda i, k: (i, 0))),
        scratch_shapes=[pltpu.VMEM((tm, fout_p), jnp.float32)],
        compiler_params=pltpu.CompilerParams(
            dimension_semantics=("parallel", "arbitrary")),
        cost_estimate=cost,
    )(a_p, xwl, s_term)

    # ---- tiny glue reduction: global batch-norm statistics -------------------
    totals = stats.reshape(num_m, 8, fout_p)
    ssum = totals[:, 0, :].sum(axis=0)
    ssq = totals[:, 1, :].sum(axis=0)
    mean = (ssum / n)[None, :]
    var = jnp.maximum(ssq / n - (ssum / n) ** 2, 0.0)[None, :]   # biased variance

    # ---- kernel 3: batch-norm + affine + residual ----------------------------
    out_p = pl.pallas_call(
        functools.partial(_bn_res_kernel, residual=residual),
        out_shape=jax.ShapeDtypeStruct((np_, fout_p), jnp.float32),
        grid=(num_m,),
        in_specs=[pl.BlockSpec((tm, fout_p), lambda i: (i, 0)),
                  pl.BlockSpec((tm, fout_p), lambda i: (i, 0)),
                  pl.BlockSpec((1, fout_p), lambda i: (0, 0)),
                  pl.BlockSpec((1, fout_p), lambda i: (0, 0)),
                  pl.BlockSpec((1, fout_p), lambda i: (0, 0)),
                  pl.BlockSpec((1, fout_p), lambda i: (0, 0))],
        out_specs=pl.BlockSpec((tm, fout_p), lambda i: (i, 0)),
        compiler_params=pltpu.CompilerParams(dimension_semantics=("parallel",)),
    )(h_pre, x_res, mean, var, gamma_p, beta_p)

    return out_p[:n, :f_out]


def init_params(key, in_feats, out_feats):
    k1, k2, k3 = jax.random.split(key, 3)
    scale = 1.0 / jnp.sqrt(in_feats)
    w_l = jax.random.uniform(k1, (out_feats, in_feats), jnp.float32, -scale, scale)
    w_r = jax.random.uniform(k2, (out_feats, in_feats), jnp.float32, -scale, scale)
    bias = jax.random.uniform(k3, (1, out_feats), jnp.float32, -scale, scale)
    gamma = jnp.ones((1, out_feats), jnp.float32)
    beta = jnp.zeros((1, out_feats), jnp.float32)
    return (w_l, w_r, bias, gamma, beta)


def _reference(feature, edge_index, params, residual=True):
    """Pure-JAX f32 reference of the same forward pass (for a sanity check)."""
    n = feature.shape[0]
    w_l, w_r, bias, gamma, beta = params
    src, dst = edge_index[0], edge_index[1]
    adj = jnp.zeros((n, n), jnp.float32).at[dst, src].add(1.0)
    deg = jnp.sum(adj, axis=1, keepdims=True)
    a = adj / jnp.maximum(deg, 1.0)
    agg = a @ feature
    h = agg @ w_l.T + feature @ w_r.T + bias.reshape(1, -1)
    h = jnp.maximum(h, 0.0)
    mean = h.mean(axis=0, keepdims=True)
    var = ((h - mean) ** 2).mean(axis=0, keepdims=True)
    h = (h - mean) * jax.lax.rsqrt(var + 1e-5)
    h = h * gamma.reshape(1, -1) + beta.reshape(1, -1)
    if residual:
        h = h + feature
    return h


if __name__ == "__main__":
    key = jax.random.PRNGKey(0)
    n_nodes, n_edges = 200, 800          # small, non-multiple of 128 to exercise padding
    in_feats = out_feats = 32            # equal -> residual path active

    k_feat, k_src, k_dst, k_par = jax.random.split(key, 4)
    feature = jax.random.normal(k_feat, (n_nodes, in_feats), jnp.float32)
    edge_index = jnp.stack([
        jax.random.randint(k_src, (n_edges,), 0, n_nodes, jnp.int32),
        jax.random.randint(k_dst, (n_edges,), 0, n_nodes, jnp.int32),
    ], axis=0)
    params = init_params(k_par, in_feats, out_feats)

    out = graphsage_layer(feature, edge_index, params)
    jax.block_until_ready(out)
    assert out.shape == (n_nodes, out_feats)
    assert bool(jnp.isfinite(out).all())

    ref = _reference(feature, edge_index, params)
    max_err = float(jnp.max(jnp.abs(out - ref)))
    assert max_err < 0.15, f"mismatch vs f32 reference: {max_err}"

    print("KERNEL_OK")
</pallas_src>

<mosaic_0001>
module attributes {stable_mosaic.version = 11 : i64} {
  func.func @_proj_kernel(%arg0: i32, %arg1: memref<128x128xbf16, #tpu.memory_space<vmem>>, %arg2: memref<128x128xbf16, #tpu.memory_space<vmem>>, %arg3: memref<128x128xbf16, #tpu.memory_space<vmem>>, %arg4: memref<1x128xf32, #tpu.memory_space<vmem>>, %arg5: memref<128x128xbf16, #tpu.memory_space<vmem>>, %arg6: memref<128x128xf32, #tpu.memory_space<vmem>>) attributes {dimension_semantics = [#tpu.dimension_semantics<parallel>], iteration_bounds = array<i64: 2>, scalar_prefetch = 0 : i64, scratch_operands = 0 : i64, tpu.core_type = #tpu.core_type<tc>, window_params = [{transform_indices = @transform_0, window_bounds = array<i64: 128, 128>}, {pipeline_mode = #tpu.pipeline_mode<synchronous>, transform_indices = @transform_1, window_bounds = array<i64: 128, 128>}, {pipeline_mode = #tpu.pipeline_mode<synchronous>, transform_indices = @transform_2, window_bounds = array<i64: 128, 128>}, {pipeline_mode = #tpu.pipeline_mode<synchronous>, transform_indices = @transform_3, window_bounds = array<i64: 1, 128>}, {transform_indices = @transform_4, window_bounds = array<i64: 128, 128>}, {transform_indices = @transform_5, window_bounds = array<i64: 128, 128>}]} {
    %c0 = arith.constant 0 : index
    %c0_0 = arith.constant 0 : index
    %0 = vector.load %arg1[%c0, %c0_0] : memref<128x128xbf16, #tpu.memory_space<vmem>>, vector<128x128xbf16>
    %c0_1 = arith.constant 0 : index
    %c0_2 = arith.constant 0 : index
    %1 = vector.load %arg2[%c0_1, %c0_2] : memref<128x128xbf16, #tpu.memory_space<vmem>>, vector<128x128xbf16>
    %cst = arith.constant dense<0.000000e+00> : vector<128x128xf32>
    %2 = tpu.matmul %0, %1, %cst {dimension_numbers = #tpu.dot_dimension_numbers<[1], [0], [0], [1], [0, 0, 1, 1], [], []>} : vector<128x128xbf16>, vector<128x128xbf16>, vector<128x128xf32> -> vector<128x128xf32>
    %c0_3 = arith.constant 0 : index
    %c0_4 = arith.constant 0 : index
    %3 = vector.load %arg3[%c0_3, %c0_4] : memref<128x128xbf16, #tpu.memory_space<vmem>>, vector<128x128xbf16>
    %cst_5 = arith.constant dense<0.000000e+00> : vector<128x128xf32>
    %4 = tpu.matmul %0, %3, %cst_5 {dimension_numbers = #tpu.dot_dimension_numbers<[1], [0], [0], [1], [0, 0, 1, 1], [], []>} : vector<128x128xbf16>, vector<128x128xbf16>, vector<128x128xf32> -> vector<128x128xf32>
    %c0_6 = arith.constant 0 : index
    %c0_7 = arith.constant 0 : index
    %5 = vector.load %arg4[%c0_6, %c0_7] : memref<1x128xf32, #tpu.memory_space<vmem>>, vector<1x128xf32>
    %6 = vector.broadcast %5 : vector<1x128xf32> to vector<128x128xf32>
    %7 = arith.addf %4, %6 : vector<128x128xf32>
    %c128_i32 = arith.constant 128 : i32
    %8 = arith.muli %arg0, %c128_i32 : i32
    %9 = tpu.iota {dimensions = array<i32: 0>} : vector<128x128xi32>
    %10 = vector.broadcast %8 : i32 to vector<128x128xi32>
    %11 = arith.addi %10, %9 : vector<128x128xi32>
    %c200_i32 = arith.constant 200 : i32
    %12 = vector.broadcast %c200_i32 : i32 to vector<128x128xi32>
    %13 = arith.cmpi slt, %11, %12 : vector<128x128xi32>
    %cst_8 = arith.constant 0.000000e+00 : f32
    %14 = vector.broadcast %cst_8 : f32 to vector<128x128xf32>
    %15 = arith.select %13, %7, %14 : vector<128x128xi1>, vector<128x128xf32>
    %16 = arith.truncf %2 : vector<128x128xf32> to vector<128x128xbf16>
    %c0_9 = arith.constant 0 : index
    %c0_10 = arith.constant 0 : index
    %17 = vector.load %arg5[%c0_9, %c0_10] : memref<128x128xbf16, #tpu.memory_space<vmem>>, vector<128x128xbf16>
    tpu.vector_store %arg5[%c0_9, %c0_10], %16 {strides = array<i32>} : memref<128x128xbf16, #tpu.memory_space<vmem>>, vector<128x128xbf16>,
    %c0_11 = arith.constant 0 : index
    %c0_12 = arith.constant 0 : index
    %18 = vector.load %arg6[%c0_11, %c0_12] : memref<128x128xf32, #tpu.memory_space<vmem>>, vector<128x128xf32>
    tpu.vector_store %arg6[%c0_11, %c0_12], %15 {strides = array<i32>} : memref<128x128xf32, #tpu.memory_space<vmem>>, vector<128x128xf32>,
    return
  }
  func.func @transform_0(%arg0: i32) -> (i32, i32) {
    %c0_i32 = arith.constant 0 : i32
    %c0_i32_0 = arith.constant 0 : i32
    return %arg0, %c0_i32 : i32, i32
  }
  func.func @transform_1(%arg0: i32) -> (i32, i32) {
    %c0_i32 = arith.constant 0 : i32
    %c0_i32_0 = arith.constant 0 : i32
    %c0_i32_1 = arith.constant 0 : i32
    return %c0_i32, %c0_i32_0 : i32, i32
  }
  func.func @transform_2(%arg0: i32) -> (i32, i32) {
    %c0_i32 = arith.constant 0 : i32
    %c0_i32_0 = arith.constant 0 : i32
    %c0_i32_1 = arith.constant 0 : i32
    return %c0_i32, %c0_i32_0 : i32, i32
  }
  func.func @transform_3(%arg0: i32) -> (i32, i32) {
    %c0_i32 = arith.constant 0 : i32
    %c0_i32_0 = arith.constant 0 : i32
    %c0_i32_1 = arith.constant 0 : i32
    return %c0_i32, %c0_i32_0 : i32, i32
  }
  func.func @transform_4(%arg0: i32) -> (i32, i32) {
    %c0_i32 = arith.constant 0 : i32
    %c0_i32_0 = arith.constant 0 : i32
    return %arg0, %c0_i32 : i32, i32
  }
  func.func @transform_5(%arg0: i32) -> (i32, i32) {
    %c0_i32 = arith.constant 0 : i32
    %c0_i32_0 = arith.constant 0 : i32
    return %arg0, %c0_i32 : i32, i32
  }
}

</mosaic_0001>

<llo_original>
// kernel: tpu_custom_call.1
$region0: #{tpu_custom_call.1}
  #allocation0 [shape = 'u32[]', space=smem, size = 0x4, offset = 0x4, fixed_abs, tag = 'smem constant byte address 0x4 - core index']
  #allocation1 [shape = 'u32[144,128]{1,0:T(1,128)}', space=vmem, size = 0x12000, scoped, tag = 'internal scratch']
  %s0 = inlined_call_operand.hbm [shape: bf16[256,128], index: 0, kind: input, shape index: {}]
  %s1 = inlined_call_operand.hbm [shape: bf16[128,128], index: 1, kind: input, shape index: {}]
  %s2 = inlined_call_operand.hbm [shape: bf16[128,128], index: 2, kind: input, shape index: {}]
  %s3 = inlined_call_operand.vmem [shape: f32[1,128], index: 3, kind: input, shape index: {}]
  %s4 = inlined_call_operand.hbm [shape: bf16[256,128], index: 4, kind: output, shape index: {0}]
  %s5 = inlined_call_operand.hbm [shape: f32[256,128], index: 5, kind: output, shape index: {1}]
  %6 = xla_tuple %s4, %s5
  %s7 = sld [smem:[#allocation0]]
  $region69: #{tpu_custom_call.1} parent=0
    _
  %s9 = ssub.s32 1, %s7
  %s10 = scalar_select 0, %s9, %s7
  $region1: #{tpu_custom_call.1} parent=0
    #allocation2 [shape = 'u8[65536]{0}', space=vmem, size = 0x10000, scoped, tag = 'input window, operand 0']
    #allocation3 [shape = 's32[2]{0}', space=sflag, size = 0x8, scoped, tag = 'scoped memory for tpu_custom_call.1']
    #allocation4 [shape = 's32[2]{0}', space=sflag, size = 0x8, scoped, tag = 'scoped memory for tpu_custom_call.1']
    #allocation5 [shape = 'u8[32768]{0}', space=vmem, size = 0x8000, scoped, tag = 'input window, operand 1, single buffered']
    #allocation6 [shape = 's32[1]{0}', space=sflag, size = 0x4, scoped, tag = 'scoped memory for tpu_custom_call.1']
    #allocation7 [shape = 'u8[32768]{0}', space=vmem, size = 0x8000, scoped, tag = 'input window, operand 2, single buffered']
    #allocation8 [shape = 'u8[65536]{0}', space=vmem, size = 0x10000, scoped, tag = 'output window, operand 0']
    #allocation9 [shape = 'u8[131072]{0}', space=vmem, size = 0x20000, scoped, tag = 'output window, operand 1']
    #allocation10 [shape = 's32[2]{0}', space=sflag, size = 0x8, scoped, tag = 'scoped memory for tpu_custom_call.1']
    %11 = vsyncpa [#allocation3], 0
    %s12 = scalar_lea.sflag [#allocation3], 1
    %13 = vsyncpa %s12, 0
    %14 = vsyncpa [#allocation6], 0
    %15 = vsyncpa [#allocation4], 0
    %s16 = scalar_lea.sflag [#allocation4], 1
    %17 = vsyncpa %s16, 0
    %18 = vsyncpa [#allocation10], 0
    %s19 = scalar_lea.sflag [#allocation10], 1
    %20 = vsyncpa %s19, 0
    loop: start=0, step=1, limit=4
    $region2: #{tpu_custom_call.1} parent=1 // loop_pre_header
      _
    $region3: #{tpu_custom_call.1} parent=1 // loop_header
      %s22 = sphi 0, %s26
      %p23 = scmp.ge.s32.totalorder %s22, 4
      %s32 = sphi 0, %s34
      %s35 = sphi 0, %s32
      %s36 = sphi 0, %s35
      %s52 = sphi 0, %s36
      %s56 = sphi 0, %s56
      %s58 = sphi 0, %s56
      %s59 = sphi 0, %s58
      %s73 = sphi 0, %s59
      %s77 = sphi 0, %s77
      %s79 = sphi 0, %s77
      %s80 = sphi 0, %s79
      %s94 = sphi 0, %s80
      %s98 = sphi 0, %s98
      %s100 = sphi 0, %s98
      %s101 = sphi 0, %s100
      %s115 = sphi 0, %s101
      %s121 = sphi 0, %s123
      %s124 = sphi 0, %s121
      %s125 = sphi 0, %s124
      %s141 = sphi 0, %s125
      %s147 = sphi 0, %s149
      %s150 = sphi 0, %s147
      %s151 = sphi 0, %s150
      %s167 = sphi 0, %s151
    $region4: #{tpu_custom_call.1} parent=1 // loop_header_branch
      %25 = sbr.rel (%p23) target = $region8
    $region5: #{tpu_custom_call.1} parent=1 // loop_body
      %s27 = ssub.s32 %s22, 1
      %s28 = ssub.s32 %s22, 2
      %s29 = sadd.s32 %s22, 1
      %s30 = ssub.s32 %s22, %s29
      %p31 = scmp.eq.s32.totalorder %s30, 0
      %s33 = sadd.s32 %s32, 1
      %s34 = scalar_select %p31, %s32, %s33
      %p37 = pneg %p31
      %p38 = scmp.eq.s32.totalorder %s22, 1
      %p39 = por %p37, %p38
      %p40 = scmp.ne.s32.totalorder %s32, %s35
      %p41 = scmp.eq.s32.totalorder %s22, 0
      %p42 = por %p40, %p41
      %p43 = scmp.ne.s32.totalorder %s32, %s35
      %p44 = scmp.eq.s32.totalorder %s27, 1
      %p45 = por %p43, %p44
      %p46 = scmp.ne.s32.totalorder %s35, %s36
      %p47 = scmp.eq.s32.totalorder %s27, 0
      %p48 = por %p46, %p47
      %p49 = scmp.ne.s32.totalorder %s35, %s36
      %p50 = scmp.eq.s32.totalorder %s28, 1
      %p51 = por %p49, %p50
      %p53 = scmp.ne.s32.totalorder %s36, %s52
      %p54 = scmp.eq.s32.totalorder %s28, 0
      %p55 = por %p53, %p54
      %s57 = sadd.s32 %s56, 1
      %p60 = scmp.eq.s32.totalorder %s22, 1
      %p61 = scmp.ne.s32.totalorder %s56, %s58
      %p62 = scmp.eq.s32.totalorder %s22, 0
      %p63 = por %p61, %p62
      %p64 = scmp.ne.s32.totalorder %s56, %s58
      %p65 = scmp.eq.s32.totalorder %s27, 1
      %p66 = por %p64, %p65
      %p67 = scmp.ne.s32.totalorder %s58, %s59
      %p68 = scmp.eq.s32.totalorder %s27, 0
      %p69 = por %p67, %p68
      %p70 = scmp.ne.s32.totalorder %s58, %s59
      %p71 = scmp.eq.s32.totalorder %s28, 1
      %p72 = por %p70, %p71
      %p74 = scmp.ne.s32.totalorder %s59, %s73
      %p75 = scmp.eq.s32.totalorder %s28, 0
      %p76 = por %p74, %p75
      %s78 = sadd.s32 %s77, 1
      %p81 = scmp.eq.s32.totalorder %s22, 1
      %p82 = scmp.ne.s32.totalorder %s77, %s79
      %p83 = scmp.eq.s32.totalorder %s22, 0
      %p84 = por %p82, %p83
      %p85 = scmp.ne.s32.totalorder %s77, %s79
      %p86 = scmp.eq.s32.totalorder %s27, 1
      %p87 = por %p85, %p86
      %p88 = scmp.ne.s32.totalorder %s79, %s80
      %p89 = scmp.eq.s32.totalorder %s27, 0
      %p90 = por %p88, %p89
      %p91 = scmp.ne.s32.totalorder %s79, %s80
      %p92 = scmp.eq.s32.totalorder %s28, 1
      %p93 = por %p91, %p92
      %p95 = scmp.ne.s32.totalorder %s80, %s94
      %p96 = scmp.eq.s32.totalorder %s28, 0
      %p97 = por %p95, %p96
      %s99 = sadd.s32 %s98, 1
      %p102 = scmp.eq.s32.totalorder %s22, 1
      %p103 = scmp.ne.s32.totalorder %s98, %s100
      %p104 = scmp.eq.s32.totalorder %s22, 0
      %p105 = por %p103, %p104
      %p106 = scmp.ne.s32.totalorder %s98, %s100
      %p107 = scmp.eq.s32.totalorder %s27, 1
      %p108 = por %p106, %p107
      %p109 = scmp.ne.s32.totalorder %s100, %s101
      %p110 = scmp.eq.s32.totalorder %s27, 0
      %p111 = por %p109, %p110
      %p112 = scmp.ne.s32.totalorder %s100, %s101
      %p113 = scmp.eq.s32.totalorder %s28, 1
      %p114 = por %p112, %p113
      %p116 = scmp.ne.s32.totalorder %s101, %s115
      %p117 = scmp.eq.s32.totalorder %s28, 0
      %p118 = por %p116, %p117
      %s119 = ssub.s32 %s22, %s29
      %p120 = scmp.eq.s32.totalorder %s119, 0
      %s122 = sadd.s32 %s121, 1
      %s123 = scalar_select %p120, %s121, %s122
      %p126 = pneg %p120
      %p127 = scmp.eq.s32.totalorder %s22, 1
      %p128 = por %p126, %p127
      %p129 = scmp.ne.s32.totalorder %s121, %s124
      %p130 = scmp.eq.s32.totalorder %s22, 0
      %p131 = por %p129, %p130
      %p132 = scmp.ne.s32.totalorder %s121, %s124
      %p133 = scmp.eq.s32.totalorder %s27, 1
      %p134 = por %p132, %p133
      %p135 = scmp.ne.s32.totalorder %s124, %s125
      %p136 = scmp.eq.s32.totalorder %s27, 0
      %p137 = por %p135, %p136
      %p138 = scmp.ne.s32.totalorder %s124, %s125
      %p139 = scmp.eq.s32.totalorder %s28, 1
      %p140 = por %p138, %p139
      %p142 = scmp.ne.s32.totalorder %s125, %s141
      %p143 = scmp.eq.s32.totalorder %s28, 0
      %p144 = por %p142, %p143
      %s145 = ssub.s32 %s22, %s29
      %p146 = scmp.eq.s32.totalorder %s145, 0
      %s148 = sadd.s32 %s147, 1
      %s149 = scalar_select %p146, %s147, %s148
      %p152 = pneg %p146
      %p153 = scmp.eq.s32.totalorder %s22, 1
      %p154 = por %p152, %p153
      %p155 = scmp.ne.s32.totalorder %s147, %s150
      %p156 = scmp.eq.s32.totalorder %s22, 0
      %p157 = por %p155, %p156
      %p158 = scmp.ne.s32.totalorder %s147, %s150
      %p159 = scmp.eq.s32.totalorder %s27, 1
      %p160 = por %p158, %p159
      %p161 = scmp.ne.s32.totalorder %s150, %s151
      %p162 = scmp.eq.s32.totalorder %s27, 0
      %p163 = por %p161, %p162
      %p164 = scmp.ne.s32.totalorder %s150, %s151
      %p165 = scmp.eq.s32.totalorder %s28, 1
      %p166 = por %p164, %p165
      %p168 = scmp.ne.s32.totalorder %s151, %s167
      %p169 = scmp.eq.s32.totalorder %s28, 0
      %p170 = por %p168, %p169
      %p171 = scmp.le.s32.totalorder 1, %s22
      %p172 = scmp.lt.s32.totalorder %s22, 3
      %p173 = pnand %p171, %p172
      %p174 = pneg %p173
      // Predicated region
      $region9: #{tpu_custom_call.1} parent=5 // pred_check
        _
      $region10: #{tpu_custom_call.1} parent=5 // pred_check_branch
        %176 = sbr.rel (%p173) target = $region12
      $region11: #{tpu_custom_call.1} parent=5 // pred_region
        %s177 = ssub.s32 %s22, 1
        // Predicated region
        $region13: #{tpu_custom_call.1} parent=11 // pred_check
          %p178 = pneg %p69
        $region14: #{tpu_custom_call.1} parent=11 // pred_check_branch
          %180 = sbr.rel (%p178) target = $region16
        $region15: #{tpu_custom_call.1} parent=11 // pred_region
          %s182 = ssub.s32 1024, 1024
          %183 = vsyncadd [#allocation6], %s182
          %s184 = sshll.u32 [#allocation5], 4
          %s185 = int_to_ptr.vmem [resolvable:$true] %s184
          %190 = dma.hbm_to_vmem [thread:$0]  %s1, 1024, %s185, [#allocation6], 64, 64, 4
        $region16: #{tpu_custom_call.1} parent=11 // pred_fallthru
          _
        // Predicated region
        $region17: #{tpu_custom_call.1} parent=11 // pred_check
          %p191 = pneg %p90
        $region18: #{tpu_custom_call.1} parent=11 // pred_check_branch
          %193 = sbr.rel (%p191) target = $region20
        $region19: #{tpu_custom_call.1} parent=11 // pred_region
          %s195 = ssub.s32 1024, 1024
          %196 = vsyncadd [#allocation6], %s195
          %s197 = sshll.u32 [#allocation7], 4
          %s198 = int_to_ptr.vmem [resolvable:$true] %s197
          %203 = dma.hbm_to_vmem [thread:$0]  %s2, 1024, %s198, [#allocation6], 64, 64, 4
        $region20: #{tpu_custom_call.1} parent=11 // pred_fallthru
          _
        // Predicated region
        $region21: #{tpu_custom_call.1} parent=11 // pred_check
          %p204 = pneg %p111
        $region22: #{tpu_custom_call.1} parent=11 // pred_check_branch
          %206 = sbr.rel (%p204) target = $region24
        $region23: #{tpu_custom_call.1} parent=11 // pred_region
          _
        $region24: #{tpu_custom_call.1} parent=11 // pred_fallthru
          _
      $region12: #{tpu_custom_call.1} parent=5 // pred_fallthru
        _
      %p207 = scmp.lt.s32.totalorder %s22, 2
      // Predicated region
      $region25: #{tpu_custom_call.1} parent=5 // pred_check
        %p208 = pneg %p207
      $region26: #{tpu_custom_call.1} parent=5 // pred_check_branch
        %210 = sbr.rel (%p208) target = $region28
      $region27: #{tpu_custom_call.1} parent=5 // pred_region
        // Predicated region
        $region29: #{tpu_custom_call.1} parent=27 // pred_check
          %p211 = pneg %p42
        $region30: #{tpu_custom_call.1} parent=27 // pred_check_branch
          %213 = sbr.rel (%p211) target = $region32
        $region31: #{tpu_custom_call.1} parent=27 // pred_region
          %s214 = sand.u32 %s32, 1
          %s215 = scalar_lea.sflag [#allocation3], %s214
          %s216 = sand.u32 %s32, 1
          %s217 = smul.addr %s216, 64
          %s218 = scalar_lea.vmem [#allocation2], %s217
          %s219 = smul.u32 16, %s22
          %s221 = ssub.s32 1024, 1024
          %222 = vsyncadd %s215, %s221
          %s223 = smul.addr %s219, 64
          %s224 = scalar_lea.hbm %s0, %s223
          %s225 = sshll.u32 %s218, 4
          %s226 = int_to_ptr.vmem [resolvable:$true] %s225
          %231 = dma.hbm_to_vmem [thread:$0]  %s224, 1024, %s226, %s215, 64, 64, 4
        $region32: #{tpu_custom_call.1} parent=27 // pred_fallthru
          _
      $region28: #{tpu_custom_call.1} parent=5 // pred_fallthru
        _
      %p232 = scmp.le.s32.totalorder 1, %s22
      %p233 = scmp.lt.s32.totalorder %s22, 3
      %p234 = pnand %p232, %p233
      %p235 = pneg %p234
      // Predicated region
      $region33: #{tpu_custom_call.1} parent=5 // pred_check
        _
      $region34: #{tpu_custom_call.1} parent=5 // pred_check_branch
        %237 = sbr.rel (%p234) target = $region36
      $region35: #{tpu_custom_call.1} parent=5 // pred_region
        %s238 = ssub.s32 %s22, 1
        %s239 = sand.u32 %s35, 1
        %s240 = scalar_lea.sflag [#allocation3], %s239
        %s241 = sand.u32 %s35, 1
        %s242 = smul.addr %s241, 64
        %s243 = scalar_lea.vmem [#allocation2], %s242
        // Predicated region
        $region37: #{tpu_custom_call.1} parent=35 // pred_check
          %p244 = pneg %p48
        $region38: #{tpu_custom_call.1} parent=35 // pred_check_branch
          %246 = sbr.rel (%p244) target = $region40
        $region39: #{tpu_custom_call.1} parent=35 // pred_region
          %247 = dma.done %s240, 1024
        $region40: #{tpu_custom_call.1} parent=35 // pred_fallthru
          _
        // Predicated region
        $region41: #{tpu_custom_call.1} parent=35 // pred_check
          %p248 = pneg %p69
        $region42: #{tpu_custom_call.1} parent=35 // pred_check_branch
          %250 = sbr.rel (%p248) target = $region44
        $region43: #{tpu_custom_call.1} parent=35 // pred_region
          %251 = dma.done [#allocation6], 1024
        $region44: #{tpu_custom_call.1} parent=35 // pred_fallthru
          _
        // Predicated region
        $region45: #{tpu_custom_call.1} parent=35 // pred_check
          %p252 = pneg %p90
        $region46: #{tpu_custom_call.1} parent=35 // pred_check_branch
          %254 = sbr.rel (%p252) target = $region48
        $region47: #{tpu_custom_call.1} parent=35 // pred_region
          %255 = dma.done [#allocation6], 1024
        $region48: #{tpu_custom_call.1} parent=35 // pred_fallthru
          _
        %s256 = sand.u32 %s35, 1
        %s257 = scalar_lea.sflag [#allocation3], %s256
        %s258 = sand.u32 %s35, 1
        %s259 = smul.addr %s258, 64
        %s260 = scalar_lea.vmem [#allocation2], %s259
        %p261 = pneg %p48
        %p262 = pneg %p45
        %p263 = pneg %p69
        %p264 = pneg %p66
        %p265 = pneg %p90
        %p266 = pneg %p87
        %p267 = pneg %p111
        %p268 = pneg %p108
        %p269 = pneg %p137
        %p270 = pneg %p134
        %s271 = sand.u32 %s124, 1
        %s272 = scalar_lea.sflag [#allocation4], %s271
        %s273 = sand.u32 %s124, 1
        %s274 = smul.addr %s273, 64
        %s275 = scalar_lea.vmem [#allocation8], %s274
        %p276 = pneg %p163
        %p277 = pneg %p160
        %s278 = sand.u32 %s150, 1
        %s279 = scalar_lea.sflag [#allocation10], %s278
        %s280 = sand.u32 %s150, 1
        %s281 = smul.addr %s280, 128
        %s282 = scalar_lea.vmem [#allocation9], %s281
        %s283 = smul.u32 16, %s27
        %s284 = smul.u32 16, %s27
        %s285 = smul.u32 16, %s27
        %v287 = vld [vmem:[%s243] sm:$0xf]
        %v288 = vld [vmem:[%s243 + $0x4] sm:$0xf]
        %v289 = vld [vmem:[%s243 + $0x8] sm:$0xf]
        %v290 = vld [vmem:[%s243 + $0xc] sm:$0xf]
        %v291 = vld [vmem:[%s243 + $0x10] sm:$0xf]
        %v292 = vld [vmem:[%s243 + $0x14] sm:$0xf]
        %v293 = vld [vmem:[%s243 + $0x18] sm:$0xf]
        %v294 = vld [vmem:[%s243 + $0x1c] sm:$0xf]
        %v295 = vld [vmem:[%s243 + $0x20] sm:$0xf]
        %v296 = vld [vmem:[%s243 + $0x24] sm:$0xf]
        %v297 = vld [vmem:[%s243 + $0x28] sm:$0xf]
        %v298 = vld [vmem:[%s243 + $0x2c] sm:$0xf]
        %v299 = vld [vmem:[%s243 + $0x30] sm:$0xf]
        %v300 = vld [vmem:[%s243 + $0x34] sm:$0xf]
        %v301 = vld [vmem:[%s243 + $0x38] sm:$0xf]
        %v302 = vld [vmem:[%s243 + $0x3c] sm:$0xf]
        %v303 = vld [vmem:[#allocation5] sm:$0xf]
        %v304 = vld [vmem:[#allocation5 + $0x4] sm:$0xf]
        %v305 = vld [vmem:[#allocation5 + $0x8] sm:$0xf]
        %v306 = vld [vmem:[#allocation5 + $0xc] sm:$0xf]
        %v307 = vld [vmem:[#allocation5 + $0x10] sm:$0xf]
        %v308 = vld [vmem:[#allocation5 + $0x14] sm:$0xf]
        %v309 = vld [vmem:[#allocation5 + $0x18] sm:$0xf]
        %v310 = vld [vmem:[#allocation5 + $0x1c] sm:$0xf]
        %v311 = vld [vmem:[#allocation5 + $0x20] sm:$0xf]
        %v312 = vld [vmem:[#allocation5 + $0x24] sm:$0xf]
        %v313 = vld [vmem:[#allocation5 + $0x28] sm:$0xf]
        %v314 = vld [vmem:[#allocation5 + $0x2c] sm:$0xf]
        %v315 = vld [vmem:[#allocation5 + $0x30] sm:$0xf]
        %v316 = vld [vmem:[#allocation5 + $0x34] sm:$0xf]
        %v317 = vld [vmem:[#allocation5 + $0x38] sm:$0xf]
        %v318 = vld [vmem:[#allocation5 + $0x3c] sm:$0xf]
        %v335 = vunpack.c.l.b16 %v287
        %v336 = vunpack.c.l.b16 %v288
        %v337 = vunpack.c.l.b16 %v289
        %v338 = vunpack.c.l.b16 %v290
        %v339 = vunpack.c.l.b16 %v291
        %v340 = vunpack.c.l.b16 %v292
        %v341 = vunpack.c.l.b16 %v293
        %v342 = vunpack.c.l.b16 %v294
        %v343 = vunpack.c.l.b16 %v295
        %v344 = vunpack.c.l.b16 %v296
        %v345 = vunpack.c.l.b16 %v297
        %v346 = vunpack.c.l.b16 %v298
        %v347 = vunpack.c.l.b16 %v299
        %v348 = vunpack.c.l.b16 %v300
        %v349 = vunpack.c.l.b16 %v301
        %v350 = vunpack.c.l.b16 %v302
        %v351 = vpack.c.b16 %v336, %v335
        %v352 = vpack.c.b16 %v338, %v337
        %v353 = vpack.c.b16 %v340, %v339
        %v354 = vpack.c.b16 %v342, %v341
        %v355 = vpack.c.b16 %v344, %v343
        %v356 = vpack.c.b16 %v346, %v345
        %v357 = vpack.c.b16 %v348, %v347
        %v358 = vpack.c.b16 %v350, %v349
        %v383 = vunpack.c.l.b16 %v303
        %v384 = vunpack.c.l.b16 %v304
        %v385 = vunpack.c.l.b16 %v305
        %v386 = vunpack.c.l.b16 %v306
        %v387 = vunpack.c.l.b16 %v307
        %v388 = vunpack.c.l.b16 %v308
        %v389 = vunpack.c.l.b16 %v309
        %v390 = vunpack.c.l.b16 %v310
        %v391 = vunpack.c.l.b16 %v311
        %v392 = vunpack.c.l.b16 %v312
        %v393 = vunpack.c.l.b16 %v313
        %v394 = vunpack.c.l.b16 %v314
        %v395 = vunpack.c.l.b16 %v315
        %v396 = vunpack.c.l.b16 %v316
        %v397 = vunpack.c.l.b16 %v317
        %v398 = vunpack.c.l.b16 %v318
        %v399 = vpack.c.b16 %v384, %v383
        %v400 = vpack.c.b16 %v386, %v385
        %v401 = vpack.c.b16 %v388, %v387
        %v402 = vpack.c.b16 %v390, %v389
        %v403 = vpack.c.b16 %v392, %v391
        %v404 = vpack.c.b16 %v394, %v393
        %v405 = vpack.c.b16 %v396, %v395
        %v406 = vpack.c.b16 %v398, %v397
        %415 = vmatprep.subr.bf16.mxu0 0
        %416 = vmatpush1.bf16.msra.mxu0 %v399
        %417 = vmatprep.subr.bf16.mxu0 0
        %418 = vmatpush1.bf16.msra.mxu0 %v400
        %419 = vmatprep.subr.bf16.mxu0 0
        %420 = vmatpush1.bf16.msra.mxu0 %v401
        %421 = vmatprep.subr.bf16.mxu0 0
        %422 = vmatpush1.bf16.msra.mxu0 %v402
        %423 = vmatprep.subr.bf16.mxu0 0
        %424 = vmatpush1.bf16.msra.mxu0 %v403
        %425 = vmatprep.subr.bf16.mxu0 0
        %426 = vmatpush1.bf16.msra.mxu0 %v404
        %427 = vmatprep.subr.bf16.mxu0 0
        %428 = vmatpush1.bf16.msra.mxu0 %v405
        %429 = vmatprep.subr.bf16.mxu0 0
        %430 = vmatpush1.bf16.msra.mxu0 %v406
        %431 = vmatprep.subr.bf16.mxu0 0
        %432 = vmatpush1.bf16.msra.mxu0 0
        %433 = vmatprep.subr.bf16.mxu0 0
        %434 = vmatpush1.bf16.msra.mxu0 0
        %435 = vmatprep.subr.bf16.mxu0 0
        %436 = vmatpush1.bf16.msra.mxu0 0
        %437 = vmatprep.subr.bf16.mxu0 0
        %438 = vmatpush1.bf16.msra.mxu0 0
        %439 = vmatprep.subr.bf16.mxu0 0
        %440 = vmatpush1.bf16.msra.mxu0 0
        %441 = vmatprep.subr.bf16.mxu0 0
        %442 = vmatpush1.bf16.msra.mxu0 0
        %443 = vmatprep.subr.bf16.mxu0 0
        %444 = vmatpush1.bf16.msra.mxu0 0
        %445 = vmatprep.subr.bf16.mxu0 0
        %446 = vmatpush1.bf16.msra.mxu0 0
        %447 = vmatprep.mubr.bf16.mxu0 0
        %448 = vmatmul.mubr.bf16.gmra.mrb[0].mxu0 %v351
        %v449 = vpop.f32.mrb[0].mxu0
        %v450 = vadd.f32 0.0, %v449
        %v451 = vpop.f32.mrb[0].mxu0
        %v452 = vpop.f32.mrb[0].mxu0
        %v453 = vadd.f32 0.0, %v452
        %v454 = vpop.f32.mrb[0].mxu0
        %455 = vmatprep.mubr.bf16.mxu0 0
        %456 = vmatmul.mubr.bf16.gmra.mrb[0].mxu0 %v352
        %v457 = vpop.f32.mrb[0].mxu0
        %v458 = vadd.f32 0.0, %v457
        %v459 = vpop.f32.mrb[0].mxu0
        %v460 = vpop.f32.mrb[0].mxu0
        %v461 = vadd.f32 0.0, %v460
        %v462 = vpop.f32.mrb[0].mxu0
        %463 = vmatprep.mubr.bf16.mxu0 0
        %464 = vmatmul.mubr.bf16.gmra.mrb[0].mxu0 %v353
        %v465 = vpop.f32.mrb[0].mxu0
        %v466 = vadd.f32 0.0, %v465
        %v467 = vpop.f32.mrb[0].mxu0
        %v468 = vpop.f32.mrb[0].mxu0
        %v469 = vadd.f32 0.0, %v468
        %v470 = vpop.f32.mrb[0].mxu0
        %471 = vmatprep.mubr.bf16.mxu0 0
        %472 = vmatmul.mubr.bf16.gmra.mrb[0].mxu0 %v354
        %v473 = vpop.f32.mrb[0].mxu0
        %v474 = vadd.f32 0.0, %v473
        %v475 = vpop.f32.mrb[0].mxu0
        %v476 = vpop.f32.mrb[0].mxu0
        %v477 = vadd.f32 0.0, %v476
        %v478 = vpop.f32.mrb[0].mxu0
        %479 = vmatprep.mubr.bf16.mxu0 0
        %480 = vmatmul.mubr.bf16.gmra.mrb[0].mxu0 %v355
        %v481 = vpop.f32.mrb[0].mxu0
        %v482 = vadd.f32 0.0, %v481
        %v483 = vpop.f32.mrb[0].mxu0
        %v484 = vpop.f32.mrb[0].mxu0
        %v485 = vadd.f32 0.0, %v484
        %v486 = vpop.f32.mrb[0].mxu0
        %487 = vmatprep.mubr.bf16.mxu0 0
        %488 = vmatmul.mubr.bf16.gmra.mrb[0].mxu0 %v356
        %v489 = vpop.f32.mrb[0].mxu0
        %v490 = vadd.f32 0.0, %v489
        %v491 = vpop.f32.mrb[0].mxu0
        %v492 = vpop.f32.mrb[0].mxu0
        %v493 = vadd.f32 0.0, %v492
        %v494 = vpop.f32.mrb[0].mxu0
        %495 = vmatprep.mubr.bf16.mxu0 0
        %496 = vmatmul.mubr.bf16.gmra.mrb[0].mxu0 %v357
        %v497 = vpop.f32.mrb[0].mxu0
        %v498 = vadd.f32 0.0, %v497
        %v499 = vpop.f32.mrb[0].mxu0
        %v500 = vpop.f32.mrb[0].mxu0
        %v501 = vadd.f32 0.0, %v500
        %v502 = vpop.f32.mrb[0].mxu0
        %503 = vmatprep.mubr.bf16.mxu0 0
        %504 = vmatmul.mubr.bf16.gmra.mrb[0].mxu0 %v358
        %v505 = vpop.f32.mrb[0].mxu0
        %v506 = vadd.f32 0.0, %v505
        %v507 = vpop.f32.mrb[0].mxu0
        %v508 = vpop.f32.mrb[0].mxu0
        %v509 = vadd.f32 0.0, %v508
        %v510 = vpop.f32.mrb[0].mxu0
        %511 = vdwg.mxu0
        %v512 = vld [vmem:[#allocation7] sm:$0xf]
        %v513 = vld [vmem:[#allocation7 + $0x4] sm:$0xf]
        %v514 = vld [vmem:[#allocation7 + $0x8] sm:$0xf]
        %v515 = vld [vmem:[#allocation7 + $0xc] sm:$0xf]
        %v516 = vld [vmem:[#allocation7 + $0x10] sm:$0xf]
        %v517 = vld [vmem:[#allocation7 + $0x14] sm:$0xf]
        %v518 = vld [vmem:[#allocation7 + $0x18] sm:$0xf]
        %v519 = vld [vmem:[#allocation7 + $0x1c] sm:$0xf]
        %v520 = vld [vmem:[#allocation7 + $0x20] sm:$0xf]
        %v521 = vld [vmem:[#allocation7 + $0x24] sm:$0xf]
        %v522 = vld [vmem:[#allocation7 + $0x28] sm:$0xf]
        %v523 = vld [vmem:[#allocation7 + $0x2c] sm:$0xf]
        %v524 = vld [vmem:[#allocation7 + $0x30] sm:$0xf]
        %v525 = vld [vmem:[#allocation7 + $0x34] sm:$0xf]
        %v526 = vld [vmem:[#allocation7 + $0x38] sm:$0xf]
        %v527 = vld [vmem:[#allocation7 + $0x3c] sm:$0xf]
        %v528 = vld [vmem:[%s3] sm:$0x1]
        %v530 = vlaneseq
        %v531 = vshrl.u32 %v530, 7
        %v532 = vsub.s32 0, %v531
        %v533 = vrot.slane %v528, %v532
        %v551 = vunpack.c.l.b16 %v512
        %v552 = vunpack.c.l.b16 %v513
        %v553 = vunpack.c.l.b16 %v514
        %v554 = vunpack.c.l.b16 %v515
        %v555 = vunpack.c.l.b16 %v516
        %v556 = vunpack.c.l.b16 %v517
        %v557 = vunpack.c.l.b16 %v518
        %v558 = vunpack.c.l.b16 %v519
        %v559 = vunpack.c.l.b16 %v520
        %v560 = vunpack.c.l.b16 %v521
        %v561 = vunpack.c.l.b16 %v522
        %v562 = vunpack.c.l.b16 %v523
        %v563 = vunpack.c.l.b16 %v524
        %v564 = vunpack.c.l.b16 %v525
        %v565 = vunpack.c.l.b16 %v526
        %v566 = vunpack.c.l.b16 %v527
        %v567 = vpack.c.b16 %v552, %v551
        %v568 = vpack.c.b16 %v554, %v553
        %v569 = vpack.c.b16 %v556, %v555
        %v570 = vpack.c.b16 %v558, %v557
        %v571 = vpack.c.b16 %v560, %v559
        %v572 = vpack.c.b16 %v562, %v561
        %v573 = vpack.c.b16 %v564, %v563
        %v574 = vpack.c.b16 %v566, %v565
        %583 = vmatprep.subr.bf16.mxu0 0
        %584 = vmatpush1.bf16.msra.mxu0 %v567
        %585 = vmatprep.subr.bf16.mxu0 0
        %586 = vmatpush1.bf16.msra.mxu0 %v568
        %587 = vmatprep.subr.bf16.mxu0 0
        %588 = vmatpush1.bf16.msra.mxu0 %v569
        %589 = vmatprep.subr.bf16.mxu0 0
        %590 = vmatpush1.bf16.msra.mxu0 %v570
        %591 = vmatprep.subr.bf16.mxu0 0
        %592 = vmatpush1.bf16.msra.mxu0 %v571
        %593 = vmatprep.subr.bf16.mxu0 0
        %594 = vmatpush1.bf16.msra.mxu0 %v572
        %595 = vmatprep.subr.bf16.mxu0 0
        %596 = vmatpush1.bf16.msra.mxu0 %v573
        %597 = vmatprep.subr.bf16.mxu0 0
        %598 = vmatpush1.bf16.msra.mxu0 %v574
        %599 = vmatprep.subr.bf16.mxu0 0
        %600 = vmatpush1.bf16.msra.mxu0 0
        %601 = vmatprep.subr.bf16.mxu0 0
        %602 = vmatpush1.bf16.msra.mxu0 0
        %603 = vmatprep.subr.bf16.mxu0 0
        %604 = vmatpush1.bf16.msra.mxu0 0
        %605 = vmatprep.subr.bf16.mxu0 0
        %606 = vmatpush1.bf16.msra.mxu0 0
        %607 = vmatprep.subr.bf16.mxu0 0
        %608 = vmatpush1.bf16.msra.mxu0 0
        %609 = vmatprep.subr.bf16.mxu0 0
        %610 = vmatpush1.bf16.msra.mxu0 0
        %611 = vmatprep.subr.bf16.mxu0 0
        %612 = vmatpush1.bf16.msra.mxu0 0
        %613 = vmatprep.subr.bf16.mxu0 0
        %614 = vmatpush1.bf16.msra.mxu0 0
        %615 = vmatprep.mubr.bf16.mxu0 0
        %616 = vmatmul.mubr.bf16.gmra.mrb[0].mxu0 %v351
        %v617 = vpop.f32.mrb[0].mxu0
        %v618 = vadd.f32 %v533, %v617
        %v619 = vpop.f32.mrb[0].mxu0
        %v620 = vpop.f32.mrb[0].mxu0
        %v621 = vadd.f32 %v533, %v620
        %v622 = vpop.f32.mrb[0].mxu0
        %623 = vmatprep.mubr.bf16.mxu0 0
        %624 = vmatmul.mubr.bf16.gmra.mrb[0].mxu0 %v352
        %v625 = vpop.f32.mrb[0].mxu0
        %v626 = vadd.f32 %v533, %v625
        %v627 = vpop.f32.mrb[0].mxu0
        %v628 = vpop.f32.mrb[0].mxu0
        %v629 = vadd.f32 %v533, %v628
        %v630 = vpop.f32.mrb[0].mxu0
        %631 = vmatprep.mubr.bf16.mxu0 0
        %632 = vmatmul.mubr.bf16.gmra.mrb[0].mxu0 %v353
        %v633 = vpop.f32.mrb[0].mxu0
        %v634 = vadd.f32 %v533, %v633
        %v635 = vpop.f32.mrb[0].mxu0
        %v636 = vpop.f32.mrb[0].mxu0
        %v637 = vadd.f32 %v533, %v636
        %v638 = vpop.f32.mrb[0].mxu0
        %639 = vmatprep.mubr.bf16.mxu0 0
        %640 = vmatmul.mubr.bf16.gmra.mrb[0].mxu0 %v354
        %v641 = vpop.f32.mrb[0].mxu0
        %v642 = vadd.f32 %v533, %v641
        %v643 = vpop.f32.mrb[0].mxu0
        %v644 = vpop.f32.mrb[0].mxu0
        %v645 = vadd.f32 %v533, %v644
        %v646 = vpop.f32.mrb[0].mxu0
        %647 = vmatprep.mubr.bf16.mxu0 0
        %648 = vmatmul.mubr.bf16.gmra.mrb[0].mxu0 %v355
        %v649 = vpop.f32.mrb[0].mxu0
        %v650 = vadd.f32 %v533, %v649
        %v651 = vpop.f32.mrb[0].mxu0
        %v652 = vpop.f32.mrb[0].mxu0
        %v653 = vadd.f32 %v533, %v652
        %v654 = vpop.f32.mrb[0].mxu0
        %655 = vmatprep.mubr.bf16.mxu0 0
        %656 = vmatmul.mubr.bf16.gmra.mrb[0].mxu0 %v356
        %v657 = vpop.f32.mrb[0].mxu0
        %v658 = vadd.f32 %v533, %v657
        %v659 = vpop.f32.mrb[0].mxu0
        %v660 = vpop.f32.mrb[0].mxu0
        %v661 = vadd.f32 %v533, %v660
        %v662 = vpop.f32.mrb[0].mxu0
        %663 = vmatprep.mubr.bf16.mxu0 0
        %664 = vmatmul.mubr.bf16.gmra.mrb[0].mxu0 %v357
        %v665 = vpop.f32.mrb[0].mxu0
        %v666 = vadd.f32 %v533, %v665
        %v667 = vpop.f32.mrb[0].mxu0
        %v668 = vpop.f32.mrb[0].mxu0
        %v669 = vadd.f32 %v533, %v668
        %v670 = vpop.f32.mrb[0].mxu0
        %671 = vmatprep.mubr.bf16.mxu0 0
        %672 = vmatmul.mubr.bf16.gmra.mrb[0].mxu0 %v358
        %v673 = vpop.f32.mrb[0].mxu0
        %v674 = vadd.f32 %v533, %v673
        %v675 = vpop.f32.mrb[0].mxu0
        %v676 = vpop.f32.mrb[0].mxu0
        %v677 = vadd.f32 %v533, %v676
        %v678 = vpop.f32.mrb[0].mxu0
        %679 = vdwg.mxu0
        %s680 = smul.u32 %s27, 128
        %v681 = vlaneseq
        %v682 = vshrl.u32 %v681, 7
        %v683 = vadd.s32 %v682, 8
        %v684 = vadd.s32 %v682, 16
        %v685 = vadd.s32 %v682, 24
        %v686 = vadd.s32 %v682, 32
        %v687 = vadd.s32 %v682, 40
        %v688 = vadd.s32 %v682, 48
        %v689 = vadd.s32 %v682, 56
        %v690 = vadd.s32 %v682, 64
        %v691 = vadd.s32 %v682, 72
        %v692 = vadd.s32 %v682, 80
        %v693 = vadd.s32 %v682, 88
        %v694 = vadd.s32 %v682, 96
        %v695 = vadd.s32 %v682, 104
        %v696 = vadd.s32 %v682, 112
        %v697 = vadd.s32 %v682, 120
        %v698 = vstv %s680
        %v699 = vadd.s32 %v698, %v682
        %v700 = vadd.s32 %v698, %v683
        %v701 = vadd.s32 %v698, %v684
        %v702 = vadd.s32 %v698, %v685
        %v703 = vadd.s32 %v698, %v686
        %v704 = vadd.s32 %v698, %v687
        %v705 = vadd.s32 %v698, %v688
        %v706 = vadd.s32 %v698, %v689
        %v707 = vadd.s32 %v698, %v690
        %v708 = vadd.s32 %v698, %v691
        %v709 = vadd.s32 %v698, %v692
        %v710 = vadd.s32 %v698, %v693
        %v711 = vadd.s32 %v698, %v694
        %v712 = vadd.s32 %v698, %v695
        %v713 = vadd.s32 %v698, %v696
        %v714 = vadd.s32 %v698, %v697
        %vm715 = vcmp.lt.s32.totalorder %v699, 200
        %vm716 = vcmp.lt.s32.totalorder %v700, 200
        %vm717 = vcmp.lt.s32.totalorder %v701, 200
        %vm718 = vcmp.lt.s32.totalorder %v702, 200
        %vm719 = vcmp.lt.s32.totalorder %v703, 200
        %vm720 = vcmp.lt.s32.totalorder %v704, 200
        %vm721 = vcmp.lt.s32.totalorder %v705, 200
        %vm722 = vcmp.lt.s32.totalorder %v706, 200
        %vm723 = vcmp.lt.s32.totalorder %v707, 200
        %vm724 = vcmp.lt.s32.totalorder %v708, 200
        %vm725 = vcmp.lt.s32.totalorder %v709, 200
        %vm726 = vcmp.lt.s32.totalorder %v710, 200
        %vm727 = vcmp.lt.s32.totalorder %v711, 200
        %vm728 = vcmp.lt.s32.totalorder %v712, 200
        %vm729 = vcmp.lt.s32.totalorder %v713, 200
        %vm730 = vcmp.lt.s32.totalorder %v714, 200
        %v731 = vsel %vm715, %v618, 0.0
        %v732 = vsel %vm716, %v621, 0.0
        %v733 = vsel %vm717, %v626, 0.0
        %v734 = vsel %vm718, %v629, 0.0
        %v735 = vsel %vm719, %v634, 0.0
        %v736 = vsel %vm720, %v637, 0.0
        %v737 = vsel %vm721, %v642, 0.0
        %v738 = vsel %vm722, %v645, 0.0
        %v739 = vsel %vm723, %v650, 0.0
        %v740 = vsel %vm724, %v653, 0.0
        %v741 = vsel %vm725, %v658, 0.0
        %v742 = vsel %vm726, %v661, 0.0
        %v743 = vsel %vm727, %v666, 0.0
        %v744 = vsel %vm728, %v669, 0.0
        %v745 = vsel %vm729, %v674, 0.0
        %v746 = vsel %vm730, %v677, 0.0
        %v747 = vpack.c.bf16 %v453, %v450
        %v748 = vpack.c.bf16 %v461, %v458
        %v749 = vpack.c.bf16 %v469, %v466
        %v750 = vpack.c.bf16 %v477, %v474
        %v751 = vpack.c.bf16 %v485, %v482
        %v752 = vpack.c.bf16 %v493, %v490
        %v753 = vpack.c.bf16 %v501, %v498
        %v754 = vpack.c.bf16 %v509, %v506
        %v763 = vunpack.c.l.b16 %v747
        %v764 = vunpack.c.h.b16 %v747
        %v765 = vunpack.c.l.b16 %v748
        %v766 = vunpack.c.h.b16 %v748
        %v767 = vunpack.c.l.b16 %v749
        %v768 = vunpack.c.h.b16 %v749
        %v769 = vunpack.c.l.b16 %v750
        %v770 = vunpack.c.h.b16 %v750
        %v771 = vunpack.c.l.b16 %v751
        %v772 = vunpack.c.h.b16 %v751
        %v773 = vunpack.c.l.b16 %v752
        %v774 = vunpack.c.h.b16 %v752
        %v775 = vunpack.c.l.b16 %v753
        %v776 = vunpack.c.h.b16 %v753
        %v777 = vunpack.c.l.b16 %v754
        %v778 = vunpack.c.h.b16 %v754
        %v779 = vpack.c.b16 %v763, %v763
        %v780 = vpack.c.b16 %v764, %v764
        %v781 = vpack.c.b16 %v765, %v765
        %v782 = vpack.c.b16 %v766, %v766
        %v783 = vpack.c.b16 %v767, %v767
        %v784 = vpack.c.b16 %v768, %v768
        %v785 = vpack.c.b16 %v769, %v769
        %v786 = vpack.c.b16 %v770, %v770
        %v787 = vpack.c.b16 %v771, %v771
        %v788 = vpack.c.b16 %v772, %v772
        %v789 = vpack.c.b16 %v773, %v773
        %v790 = vpack.c.b16 %v774, %v774
        %v791 = vpack.c.b16 %v775, %v775
        %v792 = vpack.c.b16 %v776, %v776
        %v793 = vpack.c.b16 %v777, %v777
        %v794 = vpack.c.b16 %v778, %v778
        %811 = vst [vmem:[%s275] sm:$0xf] %v779
        %812 = vst [vmem:[%s275 + $0x4] sm:$0xf] %v780
        %813 = vst [vmem:[%s275 + $0x8] sm:$0xf] %v781
        %814 = vst [vmem:[%s275 + $0xc] sm:$0xf] %v782
        %815 = vst [vmem:[%s275 + $0x10] sm:$0xf] %v783
        %816 = vst [vmem:[%s275 + $0x14] sm:$0xf] %v784
        %817 = vst [vmem:[%s275 + $0x18] sm:$0xf] %v785
        %818 = vst [vmem:[%s275 + $0x1c] sm:$0xf] %v786
        %819 = vst [vmem:[%s275 + $0x20] sm:$0xf] %v787
        %820 = vst [vmem:[%s275 + $0x24] sm:$0xf] %v788
        %821 = vst [vmem:[%s275 + $0x28] sm:$0xf] %v789
        %822 = vst [vmem:[%s275 + $0x2c] sm:$0xf] %v790
        %823 = vst [vmem:[%s275 + $0x30] sm:$0xf] %v791
        %824 = vst [vmem:[%s275 + $0x34] sm:$0xf] %v792
        %825 = vst [vmem:[%s275 + $0x38] sm:$0xf] %v793
        %826 = vst [vmem:[%s275 + $0x3c] sm:$0xf] %v794
        %827 = vst [vmem:[%s282] sm:$0xff] %v731
        %828 = vst [vmem:[%s282 + $0x8] sm:$0xff] %v732
        %829 = vst [vmem:[%s282 + $0x10] sm:$0xff] %v733
        %830 = vst [vmem:[%s282 + $0x18] sm:$0xff] %v734
        %831 = vst [vmem:[%s282 + $0x20] sm:$0xff] %v735
        %832 = vst [vmem:[%s282 + $0x28] sm:$0xff] %v736
        %833 = vst [vmem:[%s282 + $0x30] sm:$0xff] %v737
        %834 = vst [vmem:[%s282 + $0x38] sm:$0xff] %v738
        %835 = vst [vmem:[%s282 + $0x40] sm:$0xff] %v739
        %836 = vst [vmem:[%s282 + $0x48] sm:$0xff] %v740
        %837 = vst [vmem:[%s282 + $0x50] sm:$0xff] %v741
        %838 = vst [vmem:[%s282 + $0x58] sm:$0xff] %v742
        %839 = vst [vmem:[%s282 + $0x60] sm:$0xff] %v743
        %840 = vst [vmem:[%s282 + $0x68] sm:$0xff] %v744
        %841 = vst [vmem:[%s282 + $0x70] sm:$0xff] %v745
        %842 = vst [vmem:[%s282 + $0x78] sm:$0xff] %v746
        %s843 = sand.u32 %s124, 1
        %s844 = scalar_lea.sflag [#allocation4], %s843
        %s845 = sand.u32 %s124, 1
        %s846 = smul.addr %s845, 64
        %s847 = scalar_lea.vmem [#allocation8], %s846
        %s848 = sand.u32 %s150, 1
        %s849 = scalar_lea.sflag [#allocation10], %s848
        %s850 = sand.u32 %s150, 1
        %s851 = smul.addr %s850, 128
        %s852 = scalar_lea.vmem [#allocation9], %s851
        // Predicated region
        $region49: #{tpu_custom_call.1} parent=35 // pred_check
          %p853 = pneg %p134
        $region50: #{tpu_custom_call.1} parent=35 // pred_check_branch
          %855 = sbr.rel (%p853) target = $region52
        $region51: #{tpu_custom_call.1} parent=35 // pred_region
          %s856 = smul.u32 16, %s27
          %s858 = ssub.s32 1024, 1024
          %859 = vsyncadd %s844, %s858
          %s860 = smul.addr %s856, 64
          %s861 = scalar_lea.hbm %s4, %s860
          %s862 = sshll.u32 %s847, 4
          %s863 = int_to_ptr.vmem [resolvable:$true] %s862
          %868 = dma.vmem_to_hbm [thread:$0]  %s863, 1024, %s861, %s844, 64, 64, 4
        $region52: #{tpu_custom_call.1} parent=35 // pred_fallthru
          _
        // Predicated region
        $region53: #{tpu_custom_call.1} parent=35 // pred_check
          %p869 = pneg %p160
        $region54: #{tpu_custom_call.1} parent=35 // pred_check_branch
          %871 = sbr.rel (%p869) target = $region56
        $region55: #{tpu_custom_call.1} parent=35 // pred_region
          %s872 = smul.u32 16, %s27
          %s874 = ssub.s32 2048, 2048
          %875 = vsyncadd %s849, %s874
          %s876 = smul.addr %s872, 128
          %s877 = scalar_lea.hbm %s5, %s876
          %s878 = sshll.u32 %s852, 4
          %s879 = int_to_ptr.vmem [resolvable:$true] %s878
          %884 = dma.vmem_to_hbm [thread:$0]  %s879, 2048, %s877, %s849, 128, 128, 8
        $region56: #{tpu_custom_call.1} parent=35 // pred_fallthru
          _
      $region36: #{tpu_custom_call.1} parent=5 // pred_fallthru
        _
      %p885 = scmp.le.s32.totalorder 2, %s22
      // Predicated region
      $region57: #{tpu_custom_call.1} parent=5 // pred_check
        %p886 = pneg %p885
      $region58: #{tpu_custom_call.1} parent=5 // pred_check_branch
        %888 = sbr.rel (%p886) target = $region60
      $region59: #{tpu_custom_call.1} parent=5 // pred_region
        %s889 = ssub.s32 %s22, 2
        // Predicated region
        $region61: #{tpu_custom_call.1} parent=59 // pred_check
          %p890 = pneg %p140
        $region62: #{tpu_custom_call.1} parent=59 // pred_check_branch
          %892 = sbr.rel (%p890) target = $region64
        $region63: #{tpu_custom_call.1} parent=59 // pred_region
          %s893 = sand.u32 %s125, 1
          %s894 = scalar_lea.sflag [#allocation4], %s893
          %s895 = sand.u32 %s125, 1
          %s896 = smul.addr %s895, 64
          %s897 = scalar_lea.vmem [#allocation8], %s896
          %898 = dma.done %s894, 1024
        $region64: #{tpu_custom_call.1} parent=59 // pred_fallthru
          _
        // Predicated region
        $region65: #{tpu_custom_call.1} parent=59 // pred_check
          %p899 = pneg %p166
        $region66: #{tpu_custom_call.1} parent=59 // pred_check_branch
          %901 = sbr.rel (%p899) target = $region68
        $region67: #{tpu_custom_call.1} parent=59 // pred_region
          %s902 = sand.u32 %s151, 1
          %s903 = scalar_lea.sflag [#allocation10], %s902
          %s904 = sand.u32 %s151, 1
          %s905 = smul.addr %s904, 128
          %s906 = scalar_lea.vmem [#allocation9], %s905
          %907 = dma.done %s903, 2048
        $region68: #{tpu_custom_call.1} parent=59 // pred_fallthru
          _
      $region60: #{tpu_custom_call.1} parent=5 // pred_fallthru
        _
    $region6: #{tpu_custom_call.1} parent=1 // loop_footer
      %s26 = sadd.s32 1, %s22
    $region7: #{tpu_custom_call.1} parent=1 // loop_footer_branch
      %21 = sbr.rel target = $region3
    $region8: #{tpu_custom_call.1} parent=1 // loop_exit
      _
    %908 = vsyncpa [#allocation3], 1
    %s909 = scalar_lea.sflag [#allocation3], 1
    %910 = vsyncpa %s909, 1
    %911 = vsyncpa [#allocation6], 1
    %912 = vsyncpa [#allocation4], 1
    %s913 = scalar_lea.sflag [#allocation4], 1
    %914 = vsyncpa %s913, 1
    %915 = vsyncpa [#allocation10], 1
    %s916 = scalar_lea.sflag [#allocation10], 1
    %917 = vsyncpa %s916, 1

</llo_original>
